<compile_context>
chip_gen: v6e
topology: v6e:2x2x1
jax: 0.10.0
libtpu: 0.0.40
codegen_flags: <defaults>
</compile_context>

<pallas_src>
import jax
import jax.numpy as jnp
from jax.experimental import pallas as pl
from jax.experimental.pallas import tpu as pltpu


_DEFAULT_TM = 1024
_DEFAULT_TN = 512    # v5e-safe roofline tile; bump to 768 (v7x) / 1024 (v6e) if desired.
_DEFAULT_TK = 1024


def _round_up(x, m):
    return ((x + m - 1) // m) * m


# ----------------------------------------------------------------------------
# Small-shape path: one un-gridded call, full-array blocks, no padding/casting.
# ----------------------------------------------------------------------------
def _small_linear_kernel(x_ref, w_ref, b_ref, o_ref):
    xv = x_ref[...]
    wv = w_ref[...]
    if xv.dtype != wv.dtype:          # static at trace time
        xv = xv.astype(jnp.float32)
        wv = wv.astype(jnp.float32)
    o_ref[...] = (
        jnp.dot(xv, wv, preferred_element_type=jnp.float32) + b_ref[...]
    ).astype(o_ref.dtype)


def _small_forward(x, weight, bias):
    B, F = x.shape
    _, C = weight.shape
    return pl.pallas_call(
        _small_linear_kernel,
        out_shape=jax.ShapeDtypeStruct((B, C), x.dtype),
        in_specs=[
            pl.BlockSpec((B, F), lambda: (0, 0)),
            pl.BlockSpec((F, C), lambda: (0, 0)),
            pl.BlockSpec((1, C), lambda: (0, 0)),
        ],
        out_specs=pl.BlockSpec((B, C), lambda: (0, 0)),
    )(x, weight, bias.astype(jnp.float32).reshape(1, C))


# ----------------------------------------------------------------------------
# Tiled path: 3-D grid (M, N, K) with K innermost carrying the accumulation.
# ----------------------------------------------------------------------------
def _linear_kernel_resident_out(x_ref, w_ref, b_ref, o_ref):
    """f32 output block: its block index is constant across K, so it stays
    resident in VMEM and we accumulate into it directly (no scratch)."""
    k = pl.program_id(2)

    @pl.when(k == 0)
    def _init():
        o_ref[...] = jnp.zeros_like(o_ref)

    o_ref[...] += jnp.dot(x_ref[...], w_ref[...],
                          preferred_element_type=jnp.float32)

    @pl.when(k == pl.num_programs(2) - 1)
    def _finalize():
        o_ref[...] += b_ref[...]          # f32 epilogue (safe on v5e: no bf16 VPU)


def _linear_kernel_acc(x_ref, w_ref, b_ref, o_ref, acc_ref):
    """Non-f32 output: keep an f32 VMEM accumulator, cast once at finalize."""
    k = pl.program_id(2)

    @pl.when(k == 0)
    def _init():
        acc_ref[...] = jnp.zeros_like(acc_ref)

    acc_ref[...] += jnp.dot(x_ref[...], w_ref[...],
                            preferred_element_type=jnp.float32)

    @pl.when(k == pl.num_programs(2) - 1)
    def _finalize():
        o_ref[...] = (acc_ref[...] + b_ref[...]).astype(o_ref.dtype)


def prepare_output_head_params(weight, bias, *, compute_dtype=jnp.bfloat16,
                               tn=_DEFAULT_TN, tk=_DEFAULT_TK):
    """Pad + cast the static Linear parameters ONCE (outside the per-step hot
    path).  weight: (F, C), bias: (C,).  Returns (w_p, b_p) padded to tile
    multiples, with w_p in compute_dtype and b_p as (1, Cp) f32."""
    F, C = weight.shape
    tn = _round_up(tn, 128)
    tk = _round_up(tk, 128)
    TN = min(tn, _round_up(C, 128))
    TK = min(tk, _round_up(F, 128))
    Fp = _round_up(F, TK)
    Cp = _round_up(C, TN)
    w_p = jnp.pad(weight, ((0, Fp - F), (0, Cp - C))).astype(compute_dtype)
    b_p = jnp.pad(bias.astype(jnp.float32).reshape(1, C), ((0, 0), (0, Cp - C)))
    return w_p, b_p


def output_head_forward_prepared(x, w_p, b_p, num_classes, *,
                                 tm=_DEFAULT_TM, tn=_DEFAULT_TN, tk=_DEFAULT_TK):
    """Tiled forward with already-prepared (padded + cast) weight/bias."""
    B, F = x.shape
    Fp, Cp = w_p.shape
    C = num_classes

    tm = _round_up(tm, 128)
    tn = _round_up(tn, 128)
    tk = _round_up(tk, 128)
    # TM covers the whole (rounded) batch when B is modest -> weight streamed once.
    TM = min(tm, _round_up(B, 128))
    TN = min(tn, Cp)
    TK = min(tk, Fp)
    assert Cp % TN == 0 and Fp % TK == 0, (Cp, TN, Fp, TK)

    Bp = _round_up(B, TM)
    if B == Bp and F == Fp and x.dtype == w_p.dtype:
        x_p = x
    else:
        # Padding/casting only the (small) activation per call; zero-padded K
        # contributes zero partial sums, padded M rows are sliced off below.
        x_p = jnp.pad(x, ((0, Bp - B), (0, Fp - F))).astype(w_p.dtype)

    out_dtype = x.dtype
    if out_dtype == jnp.float32:
        kernel = _linear_kernel_resident_out
        scratch_shapes = []
    else:
        kernel = _linear_kernel_acc
        scratch_shapes = [pltpu.VMEM((TM, TN), jnp.float32)]

    grid = (Bp // TM, Cp // TN, Fp // TK)

    out_p = pl.pallas_call(
        kernel,
        out_shape=jax.ShapeDtypeStruct((Bp, Cp), out_dtype),
        grid_spec=pltpu.PrefetchScalarGridSpec(
            num_scalar_prefetch=0,
            grid=grid,
            in_specs=[
                pl.BlockSpec((TM, TK), lambda i, j, k: (i, k)),   # x tile
                pl.BlockSpec((TK, TN), lambda i, j, k: (k, j)),   # weight tile
                pl.BlockSpec((1, TN), lambda i, j, k: (0, j)),    # bias tile (f32)
            ],
            out_specs=pl.BlockSpec((TM, TN), lambda i, j, k: (i, j)),
            scratch_shapes=scratch_shapes,
        ),
        compiler_params=pltpu.CompilerParams(
            dimension_semantics=("parallel", "parallel", "arbitrary"),
            vmem_limit_bytes=48 * 1024 * 1024,   # headroom under v7x's 64 MiB
        ),
    )(x_p, w_p, b_p)

    return out_p[:B, :C]


# ----------------------------------------------------------------------------
# Dispatcher matching the PyTorch module's forward.
# ----------------------------------------------------------------------------
def output_head_forward(x, weight, bias, *, compute_dtype=jnp.bfloat16,
                        tm=_DEFAULT_TM, tn=_DEFAULT_TN, tk=_DEFAULT_TK,
                        force_tiled=False):
    """y = x @ weight + bias.  x: (B, F), weight: (F, C), bias: (C,)."""
    B, F = x.shape
    Fw, C = weight.shape
    assert F == Fw, (F, Fw)
    assert bias.shape == (C,), bias.shape

    # Tiny/typical output-head shapes: single full-block kernel, exact f32 math,
    # no padding, no cast, no grid-pipeline overhead.
    footprint_bytes = 4 * (B * F + F * C + B * C + C)
    if not force_tiled and footprint_bytes <= (4 << 20):
        return _small_forward(x, weight, bias)

    # NOTE: for repeated forward passes, hoist prepare_output_head_params() out
    # of the step function (the weight is a static parameter) and call
    # output_head_forward_prepared() directly to avoid re-padding/casting the
    # weight in HBM every step.
    w_p, b_p = prepare_output_head_params(
        weight, bias, compute_dtype=compute_dtype, tn=tn, tk=tk)
    return output_head_forward_prepared(x, w_p, b_p, C, tm=tm, tn=tn, tk=tk)


def init_params(key, num_input_activations=128, num_classes=1):
    # Deterministic init matching nn.Linear's default (Kaiming-uniform-ish bounds).
    k_w, k_b = jax.random.split(key)
    bound = 1.0 / jnp.sqrt(num_input_activations)
    weight = jax.random.uniform(
        k_w, (num_input_activations, num_classes), jnp.float32, -bound, bound)
    bias = jax.random.uniform(k_b, (num_classes,), jnp.float32, -bound, bound)
    return weight, bias


if __name__ == "__main__":
    key = jax.random.PRNGKey(0)
    k_x, k_p, k_x2, k_p2 = jax.random.split(key, 4)

    # 1) Module-default shapes (hits the small-shape fast path).
    batch, F, C = 8, 128, 1
    x = jax.random.normal(k_x, (batch, F), jnp.float32)
    weight, bias = init_params(k_p, F, C)
    y = output_head_forward(x, weight, bias)
    jax.block_until_ready(y)
    y_ref = x @ weight + bias
    assert y.shape == (batch, C), y.shape
    assert jnp.allclose(y, y_ref, atol=1e-2, rtol=1e-2), jnp.max(jnp.abs(y - y_ref))

    # 2) Tiled path, f32 operands (direct accumulation into resident output block).
    B2, F2, C2 = 256, 1024, 256
    x2 = jax.random.normal(k_x2, (B2, F2), jnp.float32)
    w2, b2 = init_params(k_p2, F2, C2)
    y2 = output_head_forward(x2, w2, b2, compute_dtype=jnp.float32,
                             tn=128, tk=512, force_tiled=True)
    jax.block_until_ready(y2)
    y2_ref = x2 @ w2 + b2
    assert y2.shape == (B2, C2), y2.shape
    assert jnp.allclose(y2, y2_ref, atol=1e-2, rtol=1e-2), jnp.max(jnp.abs(y2 - y2_ref))

    # 3) Tiled path, bf16 activations/weights (f32 VMEM accumulator, bf16 output).
    x3 = x2.astype(jnp.bfloat16)
    y3 = output_head_forward(x3, w2, b2, compute_dtype=jnp.bfloat16,
                             tn=128, tk=512, force_tiled=True)
    jax.block_until_ready(y3)
    y3_ref = x3.astype(jnp.float32) @ w2 + b2
    assert y3.dtype == jnp.bfloat16, y3.dtype
    assert jnp.allclose(y3.astype(jnp.float32), y3_ref, atol=5e-2, rtol=5e-2), (
        jnp.max(jnp.abs(y3.astype(jnp.float32) - y3_ref)))

    print("KERNEL_OK")
</pallas_src>

<mosaic_0001>
module attributes {stable_mosaic.version = 11 : i64} {
  func.func @_small_linear_kernel(%arg0: memref<8x128xf32, #tpu.memory_space<vmem>>, %arg1: memref<128x1xf32, #tpu.memory_space<vmem>>, %arg2: memref<1x1xf32, #tpu.memory_space<vmem>>, %arg3: memref<8x1xf32, #tpu.memory_space<vmem>>) attributes {dimension_semantics = [], scalar_prefetch = 0 : i64, scratch_operands = 0 : i64, tpu.core_type = #tpu.core_type<tc>} {
    %c0 = arith.constant 0 : index
    %c0_0 = arith.constant 0 : index
    %0 = vector.load %arg0[%c0, %c0_0] : memref<8x128xf32, #tpu.memory_space<vmem>>, vector<8x128xf32>
    %c0_1 = arith.constant 0 : index
    %c0_2 = arith.constant 0 : index
    %1 = vector.load %arg1[%c0_1, %c0_2] : memref<128x1xf32, #tpu.memory_space<vmem>>, vector<128x1xf32>
    %cst = arith.constant dense<0.000000e+00> : vector<8x1xf32>
    %2 = tpu.matmul %0, %1, %cst {dimension_numbers = #tpu.dot_dimension_numbers<[1], [0], [0], [1], [0, 0, 1, 1], [], []>} : vector<8x128xf32>, vector<128x1xf32>, vector<8x1xf32> -> vector<8x1xf32>
    %c0_3 = arith.constant 0 : index
    %c0_4 = arith.constant 0 : index
    %3 = vector.load %arg2[%c0_3, %c0_4] : memref<1x1xf32, #tpu.memory_space<vmem>>, vector<1x1xf32>
    %4 = vector.broadcast %3 : vector<1x1xf32> to vector<8x1xf32>
    %5 = arith.addf %2, %4 : vector<8x1xf32>
    %c0_5 = arith.constant 0 : index
    %c0_6 = arith.constant 0 : index
    %6 = vector.load %arg3[%c0_5, %c0_6] : memref<8x1xf32, #tpu.memory_space<vmem>>, vector<8x1xf32>
    tpu.vector_store %arg3[%c0_5, %c0_6], %5 {strides = array<i32>} : memref<8x1xf32, #tpu.memory_space<vmem>>, vector<8x1xf32>,
    return
  }
}

</mosaic_0001>

<llo_original>
// kernel: tpu_custom_call.1
$region0: #{tpu_custom_call.1}
  #allocation0 [shape = 'u32[]', space=smem, size = 0x4, offset = 0x4, fixed_abs, tag = 'smem constant byte address 0x4 - core index']
  #allocation1 [shape = 'u32[144,128]{1,0:T(1,128)}', space=vmem, size = 0x12000, scoped, tag = 'internal scratch']
  #allocation2 [shape = 'f32[1,1]{1,0:T(1,128)S(1)}', space=vmem, size = 0x200, scoped, tag = 'scoped memory for tpu_custom_call.1']
  %s0 = inlined_call_operand.vmem [shape: f32[8,128], index: 0, kind: input, shape index: {}]
  %s1 = inlined_call_operand.vmem [shape: f32[128,1], index: 1, kind: input, shape index: {}]
  %s2 = inlined_call_operand.<no memory space> [shape: f32[1,1], index: 2, kind: input, shape index: {}]
  %s3 = inlined_call_operand.vmem [shape: f32[8,1], index: 3, kind: output, shape index: {}]
  %s4 = sld [smem:[#allocation0]]
  $region22: #{tpu_custom_call.1} parent=0
    _
  %s6 = ssub.s32 1, %s4
  %s7 = scalar_select 0, %s6, %s4
  %v8 = vstv %s2
  %9 = vst [vmem:[#allocation2] sm:$0x1] %v8
  // Predicated region
  $region2: #{tpu_custom_call.1} parent=0 // pred_check
    _
  $region3: #{tpu_custom_call.1} parent=0 // pred_check_branch
    %11 = sbr.rel (0) target = $region5
  $region4: #{tpu_custom_call.1} parent=0 // pred_region
    _
  $region5: #{tpu_custom_call.1} parent=0 // pred_fallthru
    _
  // Predicated region
  $region6: #{tpu_custom_call.1} parent=0 // pred_check
    _
  $region7: #{tpu_custom_call.1} parent=0 // pred_check_branch
    %13 = sbr.rel (0) target = $region9
  $region8: #{tpu_custom_call.1} parent=0 // pred_region
    _
  $region9: #{tpu_custom_call.1} parent=0 // pred_fallthru
    _
  // Predicated region
  $region10: #{tpu_custom_call.1} parent=0 // pred_check
    _
  $region11: #{tpu_custom_call.1} parent=0 // pred_check_branch
    %15 = sbr.rel (0) target = $region13
  $region12: #{tpu_custom_call.1} parent=0 // pred_region
    _
  $region13: #{tpu_custom_call.1} parent=0 // pred_fallthru
    _
  %v16 = vld [vmem:[%s0] sm:$0xff]
  %v17 = vld [vmem:[%s1] sm:$0xff]
  %v18 = vld [vmem:[%s1 + $0x8] sm:$0xff]
  %v19 = vld [vmem:[%s1 + $0x10] sm:$0xff]
  %v20 = vld [vmem:[%s1 + $0x18] sm:$0xff]
  %v21 = vld [vmem:[%s1 + $0x20] sm:$0xff]
  %v22 = vld [vmem:[%s1 + $0x28] sm:$0xff]
  %v23 = vld [vmem:[%s1 + $0x30] sm:$0xff]
  %v24 = vld [vmem:[%s1 + $0x38] sm:$0xff]
  %v25 = vld [vmem:[%s1 + $0x40] sm:$0xff]
  %v26 = vld [vmem:[%s1 + $0x48] sm:$0xff]
  %v27 = vld [vmem:[%s1 + $0x50] sm:$0xff]
  %v28 = vld [vmem:[%s1 + $0x58] sm:$0xff]
  %v29 = vld [vmem:[%s1 + $0x60] sm:$0xff]
  %v30 = vld [vmem:[%s1 + $0x68] sm:$0xff]
  %v31 = vld [vmem:[%s1 + $0x70] sm:$0xff]
  %v32 = vld [vmem:[%s1 + $0x78] sm:$0xff]
  %v33 = vld [vmem:[#allocation2] sm:$0x1]
  %v35 = vlaneseq
  %v36 = vshrl.u32 %v35, 7
  %v37 = vsub.s32 0, %v36
  %v38 = vrot.slane %v33, %v37
  %40 = vmatprep.subr.mxu0 0.0
  %41 = vmatpush1.msra.mxu0 %v32
  %42 = vmatprep.subr.mxu0 0.0
  %43 = vmatpush1.msra.mxu0 %v31
  %44 = vmatprep.subr.mxu0 0.0
  %45 = vmatpush1.msra.mxu0 %v30
  %46 = vmatprep.subr.mxu0 0.0
  %47 = vmatpush1.msra.mxu0 %v29
  %48 = vmatprep.subr.mxu0 0.0
  %49 = vmatpush1.msra.mxu0 %v28
  %50 = vmatprep.subr.mxu0 0.0
  %51 = vmatpush1.msra.mxu0 %v27
  %52 = vmatprep.subr.mxu0 0.0
  %53 = vmatpush1.msra.mxu0 %v26
  %54 = vmatprep.subr.mxu0 0.0
  %55 = vmatpush1.msra.mxu0 %v25
  %56 = vmatprep.subr.mxu0 0.0
  %57 = vmatpush1.msra.mxu0 %v24
  %58 = vmatprep.subr.mxu0 0.0
  %59 = vmatpush1.msra.mxu0 %v23
  %60 = vmatprep.subr.mxu0 0.0
  %61 = vmatpush1.msra.mxu0 %v22
  %62 = vmatprep.subr.mxu0 0.0
  %63 = vmatpush1.msra.mxu0 %v21
  %64 = vmatprep.subr.mxu0 0.0
  %65 = vmatpush1.msra.mxu0 %v20
  %66 = vmatprep.subr.mxu0 0.0
  %67 = vmatpush1.msra.mxu0 %v19
  %68 = vmatprep.subr.mxu0 0.0
  %69 = vmatpush1.msra.mxu0 %v18
  %70 = vmatprep.subr.mxu0 0.0
  %71 = vmatpush1.msra.mxu0 %v17
  %72 = vmatprep.subr.mxu0 0.0
  %73 = vmatpush2.msra.mxu0 0.0
  %74 = vmatprep.subr.mxu0 0.0
  %75 = vmatpush2.msra.mxu0 0.0
  %76 = vmatprep.subr.mxu0 0.0
  %77 = vmatpush2.msra.mxu0 0.0
  %78 = vmatprep.subr.mxu0 0.0
  %79 = vmatpush2.msra.mxu0 0.0
  %80 = vmatprep.subr.mxu0 0.0
  %81 = vmatpush2.msra.mxu0 0.0
  %82 = vmatprep.subr.mxu0 0.0
  %83 = vmatpush2.msra.mxu0 0.0
  %84 = vmatprep.subr.mxu0 0.0
  %85 = vmatpush2.msra.mxu0 0.0
  %86 = vmatprep.subr.mxu0 0.0
  %87 = vmatpush2.msra.mxu0 0.0
  %88 = vmatprep.subr.mxu0 0.0
  %89 = vmatpush2.msra.mxu0 0.0
  %90 = vmatprep.subr.mxu0 0.0
  %91 = vmatpush2.msra.mxu0 0.0
  %92 = vmatprep.subr.mxu0 0.0
  %93 = vmatpush2.msra.mxu0 0.0
  %94 = vmatprep.subr.mxu0 0.0
  %95 = vmatpush2.msra.mxu0 0.0
  %96 = vmatprep.subr.mxu0 0.0
  %97 = vmatpush2.msra.mxu0 0.0
  %98 = vmatprep.subr.mxu0 0.0
  %99 = vmatpush2.msra.mxu0 0.0
  %100 = vmatprep.subr.mxu0 0.0
  %101 = vmatpush2.msra.mxu0 0.0
  %102 = vmatprep.subr.mxu0 0.0
  %103 = vmatpush2.msra.mxu0 0.0
  %104 = vmatprep.mubr.f32.mxu0 0.0
  %105 = vmatmul.mubr.f32.gmra.mxu0 %v16
  %v106 = vpop.f32.mrf.mxu0
  %v107 = vadd.f32 %v38, %v106
  %v108 = vpop.f32.mrf.mxu0
  %109 = vdwg.mxu0
  %vm110 = vcmask 7168
  %111 = vst.msk [vmem:[%s3] sm:$0xff] %vm110, %v107
  // Predicated region
  $region14: #{tpu_custom_call.1} parent=0 // pred_check
    _
  $region15: #{tpu_custom_call.1} parent=0 // pred_check_branch
    %113 = sbr.rel (0) target = $region17
  $region16: #{tpu_custom_call.1} parent=0 // pred_region
    _
  $region17: #{tpu_custom_call.1} parent=0 // pred_fallthru
    _
  // Predicated region
  $region18: #{tpu_custom_call.1} parent=0 // pred_check
    _
  $region19: #{tpu_custom_call.1} parent=0 // pred_check_branch
    %115 = sbr.rel (0) target = $region21
  $region20: #{tpu_custom_call.1} parent=0 // pred_region
    _
  $region21: #{tpu_custom_call.1} parent=0 // pred_fallthru
    _

</llo_original>
